<compile_context>
chip_gen: v7x
topology: tpu7x:2x2x1
jax: 0.10.0
libtpu: 0.0.40
codegen_flags: <defaults>
</compile_context>

<pallas_src>
import jax
import jax.numpy as jnp
from jax.experimental import pallas as pl
from jax.experimental.pallas import tpu as pltpu

N_FEATURE = 5          # raw inputs: [v, beta, steering, throttle, brake]
N_IN = N_FEATURE + 1   # 6 derived features fed to hidden1
N_IN_PAD = 8           # layer-1 contraction dim padded to a sublane multiple
N_HIDDEN = 64
N_OUTPUT = 2
LANES = 128
TB_MAX = 4096          # batch-lane tile; tiny VMEM footprint in this layout
HALF_PI = 1.5707963267948966


def _round_up(n, m):
    return ((n + m - 1) // m) * m


def net_v4_kernel(x_ref, w1_ref, w2_ref, w3_ref, o_ref):
    x = x_ref[...]                          # (5, TB) f32, batch on lanes
    v      = x[0:1, :]
    beta   = x[1:2, :]
    steer  = x[2:3, :]
    thrbrk = x[3:5, :]

    v_sqrt = jnp.sqrt(v)                                            # (1, TB)
    # cos & sin as one fused EUP stream: sin([beta+pi/2 ; beta]) = [cos ; sin].
    cs = jnp.sin(jnp.concatenate([beta + HALF_PI, beta], axis=0))   # (2, TB)

    feats = jnp.concatenate(
        [v_sqrt, cs, steer, thrbrk, jnp.zeros_like(thrbrk)], axis=0)  # (8, TB)

    # Layer 1, both mirrored branches fused: (2H, 8) @ (8, TB).  K tiny -> f32.
    h = jnp.tanh(jnp.dot(w1_ref[...], feats,
                         preferred_element_type=jnp.float32))       # (2H, TB)

    # Layer 2: block-diag (2H, 2H); bf16 MXU operands, f32 accumulate.
    h = jnp.tanh(jnp.dot(w2_ref[...], h.astype(jnp.bfloat16),
                         preferred_element_type=jnp.float32))       # (2H, TB)

    # Layer 3: (8, 2H) @ (2H, TB) -> (8, TB); rows 4..7 are zero padding.
    y = jnp.dot(w3_ref[...], h.astype(jnp.bfloat16),
                preferred_element_type=jnp.float32)

    vd1, bd1 = y[0:1, :], y[1:2, :]         # branch-1 outputs
    vd2, bd2 = y[2:3, :], y[3:4, :]         # branch-2 (mirrored) outputs
    two_vs = v_sqrt + v_sqrt
    out0 = (vd1 * (two_vs + vd1) + vd2 * (two_vs + vd2)) * 0.5
    out1 = (bd1 - bd2) * 0.5
    o_ref[...] = jnp.concatenate([out0, out1], axis=0)   # (2, TB) lane-dense store


def pack_params(w1, w2, w3):
    """Fold mirrored branches into block weights once, outside the hot path."""
    H = N_HIDDEN
    # Branch 2 sees [v_sqrt, cos, -sin, -steer, thr, brk] == sign-flip rows 2,3.
    sign = jnp.array([1., 1., -1., -1., 1., 1.], jnp.float32)[:, None]
    w1cat_t = jnp.concatenate([w1.T, (w1 * sign).T], axis=0)            # (2H, 6)
    w1cat_t = jnp.concatenate(
        [w1cat_t, jnp.zeros((2 * H, N_IN_PAD - N_IN), jnp.float32)], axis=1)  # (2H, 8)

    w2bd_t = jnp.zeros((2 * H, 2 * H), jnp.float32)
    w2bd_t = w2bd_t.at[:H, :H].set(w2.T).at[H:, H:].set(w2.T)           # (2H, 2H)

    w3bd_t = jnp.zeros((8, 2 * H), jnp.float32)
    w3bd_t = w3bd_t.at[0:2, :H].set(w3.T).at[2:4, H:].set(w3.T)         # (8, 2H)

    return w1cat_t, w2bd_t.astype(jnp.bfloat16), w3bd_t.astype(jnp.bfloat16)


@jax.jit
def net_v4_forward(x, packed):
    w1p, w2p, w3p = packed
    B = x.shape[0]

    # Big lane tile to amortize ~0.35us/step grid overhead, capped so large
    # batches still give >=2 grid steps (v7x megacore on the "parallel" axis).
    tb = min(TB_MAX, _round_up(max(-(-B // 2), 1), LANES))
    b_pad = _round_up(B, tb)

    x_t = x.T                                                     # (5, B)
    if b_pad != B:
        # Zero padding is benign: sqrt(0)=0, sin(0)=0; rows sliced off below.
        x_t = jnp.pad(x_t, ((0, 0), (0, b_pad - B)))

    out_t = pl.pallas_call(
        net_v4_kernel,
        out_shape=jax.ShapeDtypeStruct((N_OUTPUT, b_pad), jnp.float32),
        grid=(b_pad // tb,),
        in_specs=[
            pl.BlockSpec((N_FEATURE, tb), lambda i: (0, i)),
            pl.BlockSpec((2 * N_HIDDEN, N_IN_PAD), lambda i: (0, 0)),      # resident
            pl.BlockSpec((2 * N_HIDDEN, 2 * N_HIDDEN), lambda i: (0, 0)),  # resident
            pl.BlockSpec((8, 2 * N_HIDDEN), lambda i: (0, 0)),             # resident
        ],
        out_specs=pl.BlockSpec((N_OUTPUT, tb), lambda i: (0, i)),
        compiler_params=pltpu.CompilerParams(
            dimension_semantics=("parallel",)),
    )(x_t, w1p, w2p, w3p)

    return out_t[:, :B].T


def net_v4_ref(x, w1, w2, w3):
    """Pure-JAX reference mirroring the PyTorch forward exactly (f32)."""
    v_sqrt = jnp.sqrt(x[:, 0:1])
    beta = x[:, 1:2]
    steering = x[:, 2:3]
    tb = x[:, 3:5]
    x1 = jnp.concatenate([v_sqrt, jnp.cos(beta), jnp.sin(beta), steering, tb], axis=-1)
    x2 = jnp.concatenate([v_sqrt, jnp.cos(beta), -jnp.sin(beta), -steering, tb], axis=-1)

    def br(h):
        h = jnp.tanh(h @ w1)
        h = jnp.tanh(h @ w2)
        return h @ w3

    y1 = br(x1)
    y2 = br(x2)
    vd1, bd1 = y1[:, 0:1], y1[:, 1:2]
    vd2, bd2 = y2[:, 0:1], y2[:, 1:2]
    return jnp.concatenate(
        [vd1 * (2 * v_sqrt + vd1) + vd2 * (2 * v_sqrt + vd2), bd1 - bd2], axis=-1
    ) / 2.0


def init_params(key):
    """Deterministic init matching PyTorch Linear shapes (bias=False),
    stored transposed as (in, out)."""
    k1, k2, k3 = jax.random.split(key, 3)

    def uniform(k, shape, fan_in):
        bound = 1.0 / jnp.sqrt(jnp.float32(fan_in))
        return jax.random.uniform(k, shape, jnp.float32, -bound, bound)

    w1 = uniform(k1, (N_IN, N_HIDDEN), N_IN)          # hidden1.weight.T
    w2 = uniform(k2, (N_HIDDEN, N_HIDDEN), N_HIDDEN)  # hidden2.weight.T
    w3 = uniform(k3, (N_HIDDEN, N_OUTPUT), N_HIDDEN)  # predict.weight.T
    return w1, w2, w3


if __name__ == "__main__":
    key = jax.random.PRNGKey(0)
    kx, kw = jax.random.split(key)

    B = 10   # deliberately not a multiple of the tile to exercise padding
    # column 0 is a speed `v` (must be >= 0 because of sqrt); others unconstrained.
    v = jax.random.uniform(kx, (B, 1), jnp.float32, 0.1, 4.0)
    rest = jax.random.normal(jax.random.fold_in(kx, 1), (B, N_FEATURE - 1), jnp.float32)
    x = jnp.concatenate([v, rest], axis=-1)            # (B, 5)

    w1, w2, w3 = init_params(kw)
    packed = pack_params(w1, w2, w3)                   # block weights built once

    out = net_v4_forward(x, packed)
    out = jax.block_until_ready(out)

    ref = net_v4_ref(x, w1, w2, w3)
    assert out.shape == (B, N_OUTPUT)
    # Tolerance relaxed for single-pass bf16 MXU operands in layers 2-3
    # (f32 accumulation); typical error is ~1e-2 absolute on these magnitudes.
    assert jnp.allclose(out, ref, atol=5e-2, rtol=5e-2), (out, ref)

    print("KERNEL_OK")
</pallas_src>

<mosaic_0001>
module attributes {stable_mosaic.version = 11 : i64} {
  func.func @net_v4_kernel(%arg0: i32, %arg1: memref<5x128xf32, #tpu.memory_space<vmem>>, %arg2: memref<128x8xf32, #tpu.memory_space<vmem>>, %arg3: memref<128x128xbf16, #tpu.memory_space<vmem>>, %arg4: memref<8x128xbf16, #tpu.memory_space<vmem>>, %arg5: memref<2x128xf32, #tpu.memory_space<vmem>>) attributes {dimension_semantics = [#tpu.dimension_semantics<parallel>], iteration_bounds = array<i64: 1>, scalar_prefetch = 0 : i64, scratch_operands = 0 : i64, tpu.core_type = #tpu.core_type<tc>, window_params = [{transform_indices = @transform_0, window_bounds = array<i64: 5, 128>}, {pipeline_mode = #tpu.pipeline_mode<synchronous>, transform_indices = @transform_1, window_bounds = array<i64: 128, 8>}, {pipeline_mode = #tpu.pipeline_mode<synchronous>, transform_indices = @transform_2, window_bounds = array<i64: 128, 128>}, {pipeline_mode = #tpu.pipeline_mode<synchronous>, transform_indices = @transform_3, window_bounds = array<i64: 8, 128>}, {transform_indices = @transform_4, window_bounds = array<i64: 2, 128>}]} {
    %c0 = arith.constant 0 : index
    %c0_0 = arith.constant 0 : index
    %0 = vector.load %arg1[%c0, %c0_0] : memref<5x128xf32, #tpu.memory_space<vmem>>, vector<5x128xf32>
    %1 = vector.extract_strided_slice %0 {offsets = [0, 0], sizes = [1, 128], strides = [1, 1]} : vector<5x128xf32> to vector<1x128xf32>
    %2 = vector.extract_strided_slice %0 {offsets = [1, 0], sizes = [1, 128], strides = [1, 1]} : vector<5x128xf32> to vector<1x128xf32>
    %3 = vector.extract_strided_slice %0 {offsets = [2, 0], sizes = [1, 128], strides = [1, 1]} : vector<5x128xf32> to vector<1x128xf32>
    %4 = vector.extract_strided_slice %0 {offsets = [3, 0], sizes = [2, 128], strides = [1, 1]} : vector<5x128xf32> to vector<2x128xf32>
    %5 = math.sqrt %1 : vector<1x128xf32>
    %cst = arith.constant 1.57079637 : f32
    %6 = vector.broadcast %cst : f32 to vector<1x128xf32>
    %7 = arith.addf %2, %6 : vector<1x128xf32>
    %8 = tpu.concatenate %7, %2 in 0 : vector<1x128xf32>, vector<1x128xf32> -> vector<2x128xf32>
    %9 = math.sin %8 : vector<2x128xf32>
    %cst_1 = arith.constant 0.000000e+00 : f32
    %10 = vector.broadcast %cst_1 : f32 to vector<2x128xf32>
    %11 = tpu.concatenate %5, %9, %3, %4, %10 in 0 : vector<1x128xf32>, vector<2x128xf32>, vector<1x128xf32>, vector<2x128xf32>, vector<2x128xf32> -> vector<8x128xf32>
    %c0_2 = arith.constant 0 : index
    %c0_3 = arith.constant 0 : index
    %12 = vector.load %arg2[%c0_2, %c0_3] : memref<128x8xf32, #tpu.memory_space<vmem>>, vector<128x8xf32>
    %cst_4 = arith.constant dense<0.000000e+00> : vector<128x128xf32>
    %13 = tpu.matmul %12, %11, %cst_4 {dimension_numbers = #tpu.dot_dimension_numbers<[1], [0], [0], [1], [0, 0, 1, 1], [], []>} : vector<128x8xf32>, vector<8x128xf32>, vector<128x128xf32> -> vector<128x128xf32>
    %14 = math.tanh %13 : vector<128x128xf32>
    %c0_5 = arith.constant 0 : index
    %c0_6 = arith.constant 0 : index
    %15 = vector.load %arg3[%c0_5, %c0_6] : memref<128x128xbf16, #tpu.memory_space<vmem>>, vector<128x128xbf16>
    %16 = arith.truncf %14 : vector<128x128xf32> to vector<128x128xbf16>
    %cst_7 = arith.constant dense<0.000000e+00> : vector<128x128xf32>
    %17 = tpu.matmul %15, %16, %cst_7 {dimension_numbers = #tpu.dot_dimension_numbers<[1], [0], [0], [1], [0, 0, 1, 1], [], []>} : vector<128x128xbf16>, vector<128x128xbf16>, vector<128x128xf32> -> vector<128x128xf32>
    %18 = math.tanh %17 : vector<128x128xf32>
    %c0_8 = arith.constant 0 : index
    %c0_9 = arith.constant 0 : index
    %19 = vector.load %arg4[%c0_8, %c0_9] : memref<8x128xbf16, #tpu.memory_space<vmem>>, vector<8x128xbf16>
    %20 = arith.truncf %18 : vector<128x128xf32> to vector<128x128xbf16>
    %cst_10 = arith.constant dense<0.000000e+00> : vector<8x128xf32>
    %21 = tpu.matmul %19, %20, %cst_10 {dimension_numbers = #tpu.dot_dimension_numbers<[1], [0], [0], [1], [0, 0, 1, 1], [], []>} : vector<8x128xbf16>, vector<128x128xbf16>, vector<8x128xf32> -> vector<8x128xf32>
    %22 = vector.extract_strided_slice %21 {offsets = [0, 0], sizes = [1, 128], strides = [1, 1]} : vector<8x128xf32> to vector<1x128xf32>
    %23 = vector.extract_strided_slice %21 {offsets = [1, 0], sizes = [1, 128], strides = [1, 1]} : vector<8x128xf32> to vector<1x128xf32>
    %24 = vector.extract_strided_slice %21 {offsets = [2, 0], sizes = [1, 128], strides = [1, 1]} : vector<8x128xf32> to vector<1x128xf32>
    %25 = vector.extract_strided_slice %21 {offsets = [3, 0], sizes = [1, 128], strides = [1, 1]} : vector<8x128xf32> to vector<1x128xf32>
    %26 = arith.addf %5, %5 : vector<1x128xf32>
    %27 = arith.addf %26, %22 : vector<1x128xf32>
    %28 = arith.mulf %22, %27 : vector<1x128xf32>
    %29 = arith.addf %26, %24 : vector<1x128xf32>
    %30 = arith.mulf %24, %29 : vector<1x128xf32>
    %31 = arith.addf %28, %30 : vector<1x128xf32>
    %cst_11 = arith.constant 5.000000e-01 : f32
    %32 = vector.broadcast %cst_11 : f32 to vector<1x128xf32>
    %33 = arith.mulf %31, %32 : vector<1x128xf32>
    %34 = arith.subf %23, %25 : vector<1x128xf32>
    %cst_12 = arith.constant 5.000000e-01 : f32
    %35 = vector.broadcast %cst_12 : f32 to vector<1x128xf32>
    %36 = arith.mulf %34, %35 : vector<1x128xf32>
    %37 = tpu.concatenate %33, %36 in 0 : vector<1x128xf32>, vector<1x128xf32> -> vector<2x128xf32>
    %c0_13 = arith.constant 0 : index
    %c0_14 = arith.constant 0 : index
    %38 = vector.load %arg5[%c0_13, %c0_14] : memref<2x128xf32, #tpu.memory_space<vmem>>, vector<2x128xf32>
    tpu.vector_store %arg5[%c0_13, %c0_14], %37 {strides = array<i32>} : memref<2x128xf32, #tpu.memory_space<vmem>>, vector<2x128xf32>,
    return
  }
  func.func @transform_0(%arg0: i32) -> (i32, i32) {
    %c0_i32 = arith.constant 0 : i32
    %c0_i32_0 = arith.constant 0 : i32
    return %c0_i32, %arg0 : i32, i32
  }
  func.func @transform_1(%arg0: i32) -> (i32, i32) {
    %c0_i32 = arith.constant 0 : i32
    %c0_i32_0 = arith.constant 0 : i32
    %c0_i32_1 = arith.constant 0 : i32
    return %c0_i32, %c0_i32_0 : i32, i32
  }
  func.func @transform_2(%arg0: i32) -> (i32, i32) {
    %c0_i32 = arith.constant 0 : i32
    %c0_i32_0 = arith.constant 0 : i32
    %c0_i32_1 = arith.constant 0 : i32
    return %c0_i32, %c0_i32_0 : i32, i32
  }
  func.func @transform_3(%arg0: i32) -> (i32, i32) {
    %c0_i32 = arith.constant 0 : i32
    %c0_i32_0 = arith.constant 0 : i32
    %c0_i32_1 = arith.constant 0 : i32
    return %c0_i32, %c0_i32_0 : i32, i32
  }
  func.func @transform_4(%arg0: i32) -> (i32, i32) {
    %c0_i32 = arith.constant 0 : i32
    %c0_i32_0 = arith.constant 0 : i32
    return %c0_i32, %arg0 : i32, i32
  }
}

</mosaic_0001>

<llo_original>
// kernel: net_v4_forward.1
$region0: #{net_v4_forward.1}
  #allocation0 [shape = 'u32[]', space=smem, size = 0x4, offset = 0x4, fixed_abs, tag = 'smem constant byte address 0x4 - core index']
  #allocation1 [shape = 'u32[144,128]{1,0:T(1,128)}', space=vmem, size = 0x12000, scoped, tag = 'internal scratch']
  %s0 = inlined_call_operand.vmem [shape: f32[5,128], index: 0, kind: input, shape index: {}]
  %s1 = inlined_call_operand.vmem [shape: f32[128,8], index: 1, kind: input, shape index: {}]
  %s2 = inlined_call_operand.vmem [shape: bf16[128,128], index: 2, kind: input, shape index: {}]
  %s3 = inlined_call_operand.vmem [shape: bf16[8,128], index: 3, kind: input, shape index: {}]
  %s4 = inlined_call_operand.vmem [shape: f32[2,128], index: 4, kind: output, shape index: {}]
  %s5 = sld [smem:[#allocation0]]
  $region26: #{net_v4_forward.1} parent=0
    _
  %s7 = ssub.s32 1, %s5
  %s8 = scalar_select 0, %s7, %s5
  // Predicated region
  $region2: #{net_v4_forward.1} parent=0 // pred_check
    _
  $region3: #{net_v4_forward.1} parent=0 // pred_check_branch
    %10 = sbr.rel (0) target = $region5
  $region4: #{net_v4_forward.1} parent=0 // pred_region
    _
  $region5: #{net_v4_forward.1} parent=0 // pred_fallthru
    _
  // Predicated region
  $region6: #{net_v4_forward.1} parent=0 // pred_check
    _
  $region7: #{net_v4_forward.1} parent=0 // pred_check_branch
    %12 = sbr.rel (0) target = $region9
  $region8: #{net_v4_forward.1} parent=0 // pred_region
    _
  $region9: #{net_v4_forward.1} parent=0 // pred_fallthru
    _
  // Predicated region
  $region10: #{net_v4_forward.1} parent=0 // pred_check
    _
  $region11: #{net_v4_forward.1} parent=0 // pred_check_branch
    %14 = sbr.rel (0) target = $region13
  $region12: #{net_v4_forward.1} parent=0 // pred_region
    _
  $region13: #{net_v4_forward.1} parent=0 // pred_fallthru
    _
  // Predicated region
  $region14: #{net_v4_forward.1} parent=0 // pred_check
    _
  $region15: #{net_v4_forward.1} parent=0 // pred_check_branch
    %16 = sbr.rel (0) target = $region17
  $region16: #{net_v4_forward.1} parent=0 // pred_region
    _
  $region17: #{net_v4_forward.1} parent=0 // pred_fallthru
    _
  %v18 = vld [vmem:[%s0] sm:$0x1f]
  %v19 = vrsqrt.pop %v18
  %v20 = vmul.f32 %v18, %v19
  %vm21 = vcmp.eq.f32.partialorder %v18, inf
  %v22 = vsel %vm21, %v18, %v20
  %vm23 = vcmp.eq.f32.partialorder %v18, 0.0
  %v24 = vand.u32 %v18, 2147483648
  %v25 = vsel %vm23, %v24, %v22
  %v26 = vadd.f32 %v18, 1.5707964
  %v28 = vrot.slane %v26, 1
  %vm30 = vcmask 1040384
  %v31 = vsel %vm30, %v28, %v18
  %v32 = vand.u32 2147483647, %v31
  %vm33 = vcmp.le.f32.partialorder %v32, 0.7853982
  %vm34 = vcmp.lt.s32.totalorder %v31, 0
  %v35 = vand.u32 %v31, 2139095040
  %v36 = vshrl.u32 %v35, 23
  %v37 = vsub.s32 %v36, 127
  %v38 = vand.u32 2147483647, %v31
  %v39 = vand.u32 %v38, 8388607
  %v40 = vor.u32 %v39, 8388608
  %v41 = vsub.s32 0, %v40
  %v42 = vadd.s32 %v37, 1
  %vm43 = vcmp.gt.s32.totalorder %v42, 0
  %v44 = vsel %vm43, %v42, 0
  %v45 = vshrl.u32 %v44, 5
  %v46 = vand.u32 %v44, 31
  %v47 = vsub.s32 32, %v46
  %v48 = vshrl.u32 683565275, %v47
  %v49 = vshll.u32 683565275, %v46
  %v50 = vshrl.u32 2475754826, %v47
  %v51 = vor.u32 %v49, %v50
  %v52 = vshll.u32 2475754826, %v46
  %v53 = vshrl.u32 2131351028, %v47
  %v54 = vor.u32 %v52, %v53
  %v55 = vshll.u32 2131351028, %v46
  %v56 = vshrl.u32 2102212464, %v47
  %v57 = vor.u32 %v55, %v56
  %v58 = vshll.u32 2102212464, %v46
  %v59 = vshrl.u32 920167782, %v47
  %v60 = vor.u32 %v58, %v59
  %v61 = vshll.u32 920167782, %v46
  %v62 = vshrl.u32 1326507024, %v47
  %v63 = vor.u32 %v61, %v62
  %vm64 = vcmp.lt.s32.totalorder %v45, 1
  %vm65 = vcmp.lt.s32.totalorder %v45, 2
  %vm66 = vcmp.lt.s32.totalorder %v45, 3
  %vm67 = vcmp.lt.s32.totalorder %v45, 4
  %v68 = vsel %vm64, %v48, %v51
  %v69 = vsel %vm67, %v57, 2102212464
  %v70 = vsel %vm66, %v54, %v69
  %v71 = vsel %vm65, %v68, %v70
  %v72 = vsel %vm64, %v51, %v54
  %v73 = vsel %vm67, %v60, 920167782
  %v74 = vsel %vm66, %v57, %v73
  %v75 = vsel %vm65, %v72, %v74
  %v76 = vsel %vm64, %v54, %v57
  %v77 = vsel %vm67, %v63, 1326507024
  %v78 = vsel %vm66, %v60, %v77
  %v79 = vsel %vm65, %v76, %v78
  %v80 = vshll.u32 %v40, 8
  %v81 = vmul.u32.u64.compose %v80, %v79
  %v82 = vextract.low.u32 %v81
  %v83 = vextract.high.u32 %v81
  %v84 = vmul.u32.u64.compose %v80, %v75
  %v85 = vextract.low.u32 %v84
  %v86 = vextract.high.u32 %v84
  %v87 = vmul.u32 %v80, %v71
  %v88 = vadd.s32 %v83, %v85
  %vm89 = vc.u32 %v83, %v85
  %v90 = vadd.s32 %v86, 1
  %v91 = vsel %vm89, %v90, %v86
  %v92 = vadd.s32 %v87, %v91
  %v93 = vadd.s32 %v92, 536870912
  %v94 = vshrl.u32 %v93, 30
  %v95 = vshll.u32 %v94, 30
  %v96 = vsub.s32 %v92, %v95
  %vm97 = vcmp.lt.s32.totalorder %v96, 0
  %v98 = vsub.s32 0, %v96
  %v99 = vsel %vm97, %v98, %v96
  %v100 = vclz %v99
  %v101 = vsub.s32 %v100, 2
  %vm102 = vcmp.gt.s32.totalorder 0, %v101
  %v103 = vsel %vm102, 0, %v101
  %v104 = vsub.s32 32, %v103
  %v105 = vshll.u32 %v96, %v103
  %v106 = vshrl.u32 %v88, %v104
  %v107 = vor.u32 %v105, %v106
  %v108 = vsub.s32 4294967266, %v103
  %v109 = vadd.s32 %v108, 127
  %v110 = vshll.u32 %v109, 23
  %v111 = vor.u32 4788187, %v110
  %v112 = vand.u32 2147483647, %v111
  %v114 = vcvt.s32.f32 %v107
  %v115 = vmul.f32 %v114, %v112
  %v116 = vxor.u32 %v115, 2147483648
  %v117 = vsel %vm34, %v116, %v115
  %v118 = vsub.s32 4, %v94
  %v119 = vsel %vm34, %v118, %v94
  %v120 = vsel %vm33, %v31, %v117
  %v121 = vsel %vm33, 0, %v119
  %v122 = vcosq.f32.pop %v120
  %v123 = vsinq.f32.pop %v120
  %vm124 = vweird.f32 %v31
  %v125 = vadd.s32 %v121, 3
  %v126 = vand.u32 %v125, 3
  %vm127 = vcmp.lt.s32.totalorder %v126, 2
  %vm128 = vcmp.eq.s32.totalorder %v126, 0
  %v129 = vxor.u32 %v123, 2147483648
  %v130 = vsel %vm128, %v122, %v129
  %vm131 = vcmp.eq.s32.totalorder %v126, 2
  %v132 = vxor.u32 %v122, 2147483648
  %v133 = vsel %vm131, %v132, %v123
  %v134 = vsel %vm127, %v130, %v133
  %v135 = vsel %vm124, nan, %v134
  %v137 = vrot.slane %v135, 7
  %v140 = vrot.slane %v18, 7
  %v142 = vsel %vm30, %v25, %v137
  %vm143 = vcmask 1042432
  %v144 = vsel %vm143, %v142, %v140
  %vm145 = vcmask 1043456
  %v146 = vsel %vm145, %v144, %v140
  %vm147 = vcmask 1045504
  %v148 = vsel %vm147, %v146, 0.0
  %v149 = vld [vmem:[%s1] sm:$0xff]
  %v150 = vld [vmem:[%s1 + $0x8] sm:$0xff]
  %v151 = vld [vmem:[%s1 + $0x10] sm:$0xff]
  %v152 = vld [vmem:[%s1 + $0x18] sm:$0xff]
  %v153 = vld [vmem:[%s1 + $0x20] sm:$0xff]
  %v154 = vld [vmem:[%s1 + $0x28] sm:$0xff]
  %v155 = vld [vmem:[%s1 + $0x30] sm:$0xff]
  %v156 = vld [vmem:[%s1 + $0x38] sm:$0xff]
  %v157 = vld [vmem:[%s1 + $0x40] sm:$0xff]
  %v158 = vld [vmem:[%s1 + $0x48] sm:$0xff]
  %v159 = vld [vmem:[%s1 + $0x50] sm:$0xff]
  %v160 = vld [vmem:[%s1 + $0x58] sm:$0xff]
  %v161 = vld [vmem:[%s1 + $0x60] sm:$0xff]
  %v162 = vld [vmem:[%s1 + $0x68] sm:$0xff]
  %v163 = vld [vmem:[%s1 + $0x70] sm:$0xff]
  %v164 = vld [vmem:[%s1 + $0x78] sm:$0xff]
  %vm165 = vcmask 64512
  %v167 = vsel %vm165, %v149, 0
  %v170 = vsel %vm165, %v150, 0
  %v173 = vsel %vm165, %v151, 0
  %v176 = vsel %vm165, %v152, 0
  %v179 = vsel %vm165, %v153, 0
  %v182 = vsel %vm165, %v154, 0
  %v185 = vsel %vm165, %v155, 0
  %v188 = vsel %vm165, %v156, 0
  %v191 = vsel %vm165, %v157, 0
  %v194 = vsel %vm165, %v158, 0
  %v197 = vsel %vm165, %v159, 0
  %v200 = vsel %vm165, %v160, 0
  %v203 = vsel %vm165, %v161, 0
  %v206 = vsel %vm165, %v162, 0
  %v209 = vsel %vm165, %v163, 0
  %v212 = vsel %vm165, %v164, 0
  %214 = vmatprep.subr.mxu0 0.0
  %215 = vmatpush1.msra.mxu0 %v148
  %216 = vmatprep.subr.mxu0 0.0
  %217 = vmatpush1.msra.mxu0 0.0
  %218 = vmatprep.subr.mxu0 0.0
  %219 = vmatpush1.msra.mxu0 0.0
  %220 = vmatprep.subr.mxu0 0.0
  %221 = vmatpush1.msra.mxu0 0.0
  %222 = vmatprep.subr.mxu0 0.0
  %223 = vmatpush1.msra.mxu0 0.0
  %224 = vmatprep.subr.mxu0 0.0
  %225 = vmatpush1.msra.mxu0 0.0
  %226 = vmatprep.subr.mxu0 0.0
  %227 = vmatpush1.msra.mxu0 0.0
  %228 = vmatprep.subr.mxu0 0.0
  %229 = vmatpush1.msra.mxu0 0.0
  %230 = vmatprep.subr.mxu0 0.0
  %231 = vmatpush1.msra.mxu0 0.0
  %232 = vmatprep.subr.mxu0 0.0
  %233 = vmatpush1.msra.mxu0 0.0
  %234 = vmatprep.subr.mxu0 0.0
  %235 = vmatpush1.msra.mxu0 0.0
  %236 = vmatprep.subr.mxu0 0.0
  %237 = vmatpush1.msra.mxu0 0.0
  %238 = vmatprep.subr.mxu0 0.0
  %239 = vmatpush1.msra.mxu0 0.0
  %240 = vmatprep.subr.mxu0 0.0
  %241 = vmatpush1.msra.mxu0 0.0
  %242 = vmatprep.subr.mxu0 0.0
  %243 = vmatpush1.msra.mxu0 0.0
  %244 = vmatprep.subr.mxu0 0.0
  %245 = vmatpush1.msra.mxu0 0.0
  %246 = vmatprep.subr.mxu0 0.0
  %247 = vmatpush1.msra.mxu0 0.0
  %248 = vmatprep.subr.mxu0 0.0
  %249 = vmatpush1.msra.mxu0 0.0
  %250 = vmatprep.subr.mxu0 0.0
  %251 = vmatpush1.msra.mxu0 0.0
  %252 = vmatprep.subr.mxu0 0.0
  %253 = vmatpush1.msra.mxu0 0.0
  %254 = vmatprep.subr.mxu0 0.0
  %255 = vmatpush1.msra.mxu0 0.0
  %256 = vmatprep.subr.mxu0 0.0
  %257 = vmatpush1.msra.mxu0 0.0
  %258 = vmatprep.subr.mxu0 0.0
  %259 = vmatpush1.msra.mxu0 0.0
  %260 = vmatprep.subr.mxu0 0.0
  %261 = vmatpush1.msra.mxu0 0.0
  %262 = vmatprep.subr.mxu0 0.0
  %263 = vmatpush1.msra.mxu0 0.0
  %264 = vmatprep.subr.mxu0 0.0
  %265 = vmatpush1.msra.mxu0 0.0
  %266 = vmatprep.subr.mxu0 0.0
  %267 = vmatpush1.msra.mxu0 0.0
  %268 = vmatprep.subr.mxu0 0.0
  %269 = vmatpush1.msra.mxu0 0.0
  %270 = vmatprep.subr.mxu0 0.0
  %271 = vmatpush1.msra.mxu0 0.0
  %272 = vmatprep.subr.mxu0 0.0
  %273 = vmatpush1.msra.mxu0 0.0
  %274 = vmatprep.subr.mxu0 0.0
  %275 = vmatpush1.msra.mxu0 0.0
  %276 = vmatprep.subr.mxu0 0.0
  %277 = vmatpush1.msra.mxu0 0.0
  %278 = vmatprep.mubr.f32.mxu0 0.0
  %279 = vmatmul.mubr.f32.gmra.mrb[0].mxu0 %v167
  %v280 = vpop.f32.mrb[0].mxu0
  %v281 = vadd.f32 0.0, %v280
  %v282 = vpop.f32.mrb[0].mxu0
  %283 = vmatprep.mubr.f32.mxu0 0.0
  %284 = vmatmul.mubr.f32.gmra.mrb[0].mxu0 %v170
  %v285 = vpop.f32.mrb[0].mxu0
  %v286 = vadd.f32 0.0, %v285
  %v287 = vpop.f32.mrb[0].mxu0
  %288 = vmatprep.mubr.f32.mxu0 0.0
  %289 = vmatmul.mubr.f32.gmra.mrb[0].mxu0 %v173
  %v290 = vpop.f32.mrb[0].mxu0
  %v291 = vadd.f32 0.0, %v290
  %v292 = vpop.f32.mrb[0].mxu0
  %293 = vmatprep.mubr.f32.mxu0 0.0
  %294 = vmatmul.mubr.f32.gmra.mrb[0].mxu0 %v176
  %v295 = vpop.f32.mrb[0].mxu0
  %v296 = vadd.f32 0.0, %v295
  %v297 = vpop.f32.mrb[0].mxu0
  %298 = vmatprep.mubr.f32.mxu0 0.0
  %299 = vmatmul.mubr.f32.gmra.mrb[0].mxu0 %v179
  %v300 = vpop.f32.mrb[0].mxu0
  %v301 = vadd.f32 0.0, %v300
  %v302 = vpop.f32.mrb[0].mxu0
  %303 = vmatprep.mubr.f32.mxu0 0.0
  %304 = vmatmul.mubr.f32.gmra.mrb[0].mxu0 %v182
  %v305 = vpop.f32.mrb[0].mxu0
  %v306 = vadd.f32 0.0, %v305
  %v307 = vpop.f32.mrb[0].mxu0
  %308 = vmatprep.mubr.f32.mxu0 0.0
  %309 = vmatmul.mubr.f32.gmra.mrb[0].mxu0 %v185
  %v310 = vpop.f32.mrb[0].mxu0
  %v311 = vadd.f32 0.0, %v310
  %v312 = vpop.f32.mrb[0].mxu0
  %313 = vmatprep.mubr.f32.mxu0 0.0
  %314 = vmatmul.mubr.f32.gmra.mrb[0].mxu0 %v188
  %v315 = vpop.f32.mrb[0].mxu0
  %v316 = vadd.f32 0.0, %v315
  %v317 = vpop.f32.mrb[0].mxu0
  %318 = vmatprep.mubr.f32.mxu0 0.0
  %319 = vmatmul.mubr.f32.gmra.mrb[0].mxu0 %v191
  %v320 = vpop.f32.mrb[0].mxu0
  %v321 = vadd.f32 0.0, %v320
  %v322 = vpop.f32.mrb[0].mxu0
  %323 = vmatprep.mubr.f32.mxu0 0.0
  %324 = vmatmul.mubr.f32.gmra.mrb[0].mxu0 %v194
  %v325 = vpop.f32.mrb[0].mxu0
  %v326 = vadd.f32 0.0, %v325
  %v327 = vpop.f32.mrb[0].mxu0
  %328 = vmatprep.mubr.f32.mxu0 0.0
  %329 = vmatmul.mubr.f32.gmra.mrb[0].mxu0 %v197
  %v330 = vpop.f32.mrb[0].mxu0
  %v331 = vadd.f32 0.0, %v330
  %v332 = vpop.f32.mrb[0].mxu0
  %333 = vmatprep.mubr.f32.mxu0 0.0
  %334 = vmatmul.mubr.f32.gmra.mrb[0].mxu0 %v200
  %v335 = vpop.f32.mrb[0].mxu0
  %v336 = vadd.f32 0.0, %v335
  %v337 = vpop.f32.mrb[0].mxu0
  %338 = vmatprep.mubr.f32.mxu0 0.0
  %339 = vmatmul.mubr.f32.gmra.mrb[0].mxu0 %v203
  %v340 = vpop.f32.mrb[0].mxu0
  %v341 = vadd.f32 0.0, %v340
  %v342 = vpop.f32.mrb[0].mxu0
  %343 = vmatprep.mubr.f32.mxu0 0.0
  %344 = vmatmul.mubr.f32.gmra.mrb[0].mxu0 %v206
  %v345 = vpop.f32.mrb[0].mxu0
  %v346 = vadd.f32 0.0, %v345
  %v347 = vpop.f32.mrb[0].mxu0
  %348 = vmatprep.mubr.f32.mxu0 0.0
  %349 = vmatmul.mubr.f32.gmra.mrb[0].mxu0 %v209
  %v350 = vpop.f32.mrb[0].mxu0
  %v351 = vadd.f32 0.0, %v350
  %v352 = vpop.f32.mrb[0].mxu0
  %353 = vmatprep.mubr.f32.mxu0 0.0
  %354 = vmatmul.mubr.f32.gmra.mrb[0].mxu0 %v212
  %v355 = vpop.f32.mrb[0].mxu0
  %v356 = vadd.f32 0.0, %v355
  %v357 = vpop.f32.mrb[0].mxu0
  %358 = vdwg.mxu0
  %v359 = vtanh.pop %v281
  %v360 = vtanh.pop %v286
  %v361 = vtanh.pop %v291
  %v362 = vtanh.pop %v296
  %v363 = vtanh.pop %v301
  %v364 = vtanh.pop %v306
  %v365 = vtanh.pop %v311
  %v366 = vtanh.pop %v316
  %v367 = vtanh.pop %v321
  %v368 = vtanh.pop %v326
  %v369 = vtanh.pop %v331
  %v370 = vtanh.pop %v336
  %v371 = vtanh.pop %v341
  %v372 = vtanh.pop %v346
  %v373 = vtanh.pop %v351
  %v374 = vtanh.pop %v356
  %v375 = vld [vmem:[%s2] sm:$0xf]
  %v376 = vld [vmem:[%s2 + $0x4] sm:$0xf]
  %v377 = vld [vmem:[%s2 + $0x8] sm:$0xf]
  %v378 = vld [vmem:[%s2 + $0xc] sm:$0xf]
  %v379 = vld [vmem:[%s2 + $0x10] sm:$0xf]
  %v380 = vld [vmem:[%s2 + $0x14] sm:$0xf]
  %v381 = vld [vmem:[%s2 + $0x18] sm:$0xf]
  %v382 = vld [vmem:[%s2 + $0x1c] sm:$0xf]
  %v383 = vld [vmem:[%s2 + $0x20] sm:$0xf]
  %v384 = vld [vmem:[%s2 + $0x24] sm:$0xf]
  %v385 = vld [vmem:[%s2 + $0x28] sm:$0xf]
  %v386 = vld [vmem:[%s2 + $0x2c] sm:$0xf]
  %v387 = vld [vmem:[%s2 + $0x30] sm:$0xf]
  %v388 = vld [vmem:[%s2 + $0x34] sm:$0xf]
  %v389 = vld [vmem:[%s2 + $0x38] sm:$0xf]
  %v390 = vld [vmem:[%s2 + $0x3c] sm:$0xf]
  %v391 = vpack.c.bf16 %v360, %v359
  %v392 = vpack.c.bf16 %v362, %v361
  %v393 = vpack.c.bf16 %v364, %v363
  %v394 = vpack.c.bf16 %v366, %v365
  %v395 = vpack.c.bf16 %v368, %v367
  %v396 = vpack.c.bf16 %v370, %v369
  %v397 = vpack.c.bf16 %v372, %v371
  %v398 = vpack.c.bf16 %v374, %v373
  %v415 = vunpack.c.l.b16 %v375
  %v416 = vunpack.c.l.b16 %v376
  %v417 = vunpack.c.l.b16 %v377
  %v418 = vunpack.c.l.b16 %v378
  %v419 = vunpack.c.l.b16 %v379
  %v420 = vunpack.c.l.b16 %v380
  %v421 = vunpack.c.l.b16 %v381
  %v422 = vunpack.c.l.b16 %v382
  %v423 = vunpack.c.l.b16 %v383
  %v424 = vunpack.c.l.b16 %v384
  %v425 = vunpack.c.l.b16 %v385
  %v426 = vunpack.c.l.b16 %v386
  %v427 = vunpack.c.l.b16 %v387
  %v428 = vunpack.c.l.b16 %v388
  %v429 = vunpack.c.l.b16 %v389
  %v430 = vunpack.c.l.b16 %v390
  %v431 = vpack.c.b16 %v416, %v415
  %v432 = vpack.c.b16 %v418, %v417
  %v433 = vpack.c.b16 %v420, %v419
  %v434 = vpack.c.b16 %v422, %v421
  %v435 = vpack.c.b16 %v424, %v423
  %v436 = vpack.c.b16 %v426, %v425
  %v437 = vpack.c.b16 %v428, %v427
  %v438 = vpack.c.b16 %v430, %v429
  %447 = vmatprep.subr.bf16.mxu0 0
  %448 = vmatpush1.bf16.msra.mxu0 %v391
  %449 = vmatprep.subr.bf16.mxu0 0
  %450 = vmatpush1.bf16.msra.mxu0 %v392
  %451 = vmatprep.subr.bf16.mxu0 0
  %452 = vmatpush1.bf16.msra.mxu0 %v393
  %453 = vmatprep.subr.bf16.mxu0 0
  %454 = vmatpush1.bf16.msra.mxu0 %v394
  %455 = vmatprep.subr.bf16.mxu0 0
  %456 = vmatpush1.bf16.msra.mxu0 %v395
  %457 = vmatprep.subr.bf16.mxu0 0
  %458 = vmatpush1.bf16.msra.mxu0 %v396
  %459 = vmatprep.subr.bf16.mxu0 0
  %460 = vmatpush1.bf16.msra.mxu0 %v397
  %461 = vmatprep.subr.bf16.mxu0 0
  %462 = vmatpush1.bf16.msra.mxu0 %v398
  %463 = vmatprep.subr.bf16.mxu0 0
  %464 = vmatpush1.bf16.msra.mxu0 0
  %465 = vmatprep.subr.bf16.mxu0 0
  %466 = vmatpush1.bf16.msra.mxu0 0
  %467 = vmatprep.subr.bf16.mxu0 0
  %468 = vmatpush1.bf16.msra.mxu0 0
  %469 = vmatprep.subr.bf16.mxu0 0
  %470 = vmatpush1.bf16.msra.mxu0 0
  %471 = vmatprep.subr.bf16.mxu0 0
  %472 = vmatpush1.bf16.msra.mxu0 0
  %473 = vmatprep.subr.bf16.mxu0 0
  %474 = vmatpush1.bf16.msra.mxu0 0
  %475 = vmatprep.subr.bf16.mxu0 0
  %476 = vmatpush1.bf16.msra.mxu0 0
  %477 = vmatprep.subr.bf16.mxu0 0
  %478 = vmatpush1.bf16.msra.mxu0 0
  %479 = vmatprep.mubr.bf16.mxu0 0
  %480 = vmatmul.mubr.bf16.gmra.mrb[0].mxu0 %v431
  %v481 = vpop.f32.mrb[0].mxu0
  %v482 = vadd.f32 0.0, %v481
  %v483 = vpop.f32.mrb[0].mxu0
  %v484 = vpop.f32.mrb[0].mxu0
  %v485 = vadd.f32 0.0, %v484
  %v486 = vpop.f32.mrb[0].mxu0
  %487 = vmatprep.mubr.bf16.mxu0 0
  %488 = vmatmul.mubr.bf16.gmra.mrb[0].mxu0 %v432
  %v489 = vpop.f32.mrb[0].mxu0
  %v490 = vadd.f32 0.0, %v489
  %v491 = vpop.f32.mrb[0].mxu0
  %v492 = vpop.f32.mrb[0].mxu0
  %v493 = vadd.f32 0.0, %v492
  %v494 = vpop.f32.mrb[0].mxu0
  %495 = vmatprep.mubr.bf16.mxu0 0
  %496 = vmatmul.mubr.bf16.gmra.mrb[0].mxu0 %v433
  %v497 = vpop.f32.mrb[0].mxu0
  %v498 = vadd.f32 0.0, %v497
  %v499 = vpop.f32.mrb[0].mxu0
  %v500 = vpop.f32.mrb[0].mxu0
  %v501 = vadd.f32 0.0, %v500
  %v502 = vpop.f32.mrb[0].mxu0
  %503 = vmatprep.mubr.bf16.mxu0 0
  %504 = vmatmul.mubr.bf16.gmra.mrb[0].mxu0 %v434
  %v505 = vpop.f32.mrb[0].mxu0
  %v506 = vadd.f32 0.0, %v505
  %v507 = vpop.f32.mrb[0].mxu0
  %v508 = vpop.f32.mrb[0].mxu0
  %v509 = vadd.f32 0.0, %v508
  %v510 = vpop.f32.mrb[0].mxu0
  %511 = vmatprep.mubr.bf16.mxu0 0
  %512 = vmatmul.mubr.bf16.gmra.mrb[0].mxu0 %v435
  %v513 = vpop.f32.mrb[0].mxu0
  %v514 = vadd.f32 0.0, %v513
  %v515 = vpop.f32.mrb[0].mxu0
  %v516 = vpop.f32.mrb[0].mxu0
  %v517 = vadd.f32 0.0, %v516
  %v518 = vpop.f32.mrb[0].mxu0
  %519 = vmatprep.mubr.bf16.mxu0 0
  %520 = vmatmul.mubr.bf16.gmra.mrb[0].mxu0 %v436
  %v521 = vpop.f32.mrb[0].mxu0
  %v522 = vadd.f32 0.0, %v521
  %v523 = vpop.f32.mrb[0].mxu0
  %v524 = vpop.f32.mrb[0].mxu0
  %v525 = vadd.f32 0.0, %v524
  %v526 = vpop.f32.mrb[0].mxu0
  %527 = vmatprep.mubr.bf16.mxu0 0
  %528 = vmatmul.mubr.bf16.gmra.mrb[0].mxu0 %v437
  %v529 = vpop.f32.mrb[0].mxu0
  %v530 = vadd.f32 0.0, %v529
  %v531 = vpop.f32.mrb[0].mxu0
  %v532 = vpop.f32.mrb[0].mxu0
  %v533 = vadd.f32 0.0, %v532
  %v534 = vpop.f32.mrb[0].mxu0
  %535 = vmatprep.mubr.bf16.mxu0 0
  %536 = vmatmul.mubr.bf16.gmra.mrb[0].mxu0 %v438
  %v537 = vpop.f32.mrb[0].mxu0
  %v538 = vadd.f32 0.0, %v537
  %v539 = vpop.f32.mrb[0].mxu0
  %v540 = vpop.f32.mrb[0].mxu0
  %v541 = vadd.f32 0.0, %v540
  %v542 = vpop.f32.mrb[0].mxu0
  %543 = vdwg.mxu0
  %v544 = vtanh.pop %v482
  %v545 = vtanh.pop %v485
  %v546 = vtanh.pop %v490
  %v547 = vtanh.pop %v493
  %v548 = vtanh.pop %v498
  %v549 = vtanh.pop %v501
  %v550 = vtanh.pop %v506
  %v551 = vtanh.pop %v509
  %v552 = vtanh.pop %v514
  %v553 = vtanh.pop %v517
  %v554 = vtanh.pop %v522
  %v555 = vtanh.pop %v525
  %v556 = vtanh.pop %v530
  %v557 = vtanh.pop %v533
  %v558 = vtanh.pop %v538
  %v559 = vtanh.pop %v541
  %v560 = vld [vmem:[%s3] sm:$0xf]
  %v561 = vpack.c.bf16 %v545, %v544
  %v562 = vpack.c.bf16 %v547, %v546
  %v563 = vpack.c.bf16 %v549, %v548
  %v564 = vpack.c.bf16 %v551, %v550
  %v565 = vpack.c.bf16 %v553, %v552
  %v566 = vpack.c.bf16 %v555, %v554
  %v567 = vpack.c.bf16 %v557, %v556
  %v568 = vpack.c.bf16 %v559, %v558
  %569 = vmatprep.subr.bf16.mxu0 0
  %570 = vmatpush1.bf16.msra.mxu0 %v561
  %571 = vmatprep.subr.bf16.mxu0 0
  %572 = vmatpush1.bf16.msra.mxu0 %v562
  %573 = vmatprep.subr.bf16.mxu0 0
  %574 = vmatpush1.bf16.msra.mxu0 %v563
  %575 = vmatprep.subr.bf16.mxu0 0
  %576 = vmatpush1.bf16.msra.mxu0 %v564
  %577 = vmatprep.subr.bf16.mxu0 0
  %578 = vmatpush1.bf16.msra.mxu0 %v565
  %579 = vmatprep.subr.bf16.mxu0 0
  %580 = vmatpush1.bf16.msra.mxu0 %v566
  %581 = vmatprep.subr.bf16.mxu0 0
  %582 = vmatpush1.bf16.msra.mxu0 %v567
  %583 = vmatprep.subr.bf16.mxu0 0
  %584 = vmatpush1.bf16.msra.mxu0 %v568
  %585 = vmatprep.subr.bf16.mxu0 0
  %586 = vmatpush1.bf16.msra.mxu0 0
  %587 = vmatprep.subr.bf16.mxu0 0
  %588 = vmatpush1.bf16.msra.mxu0 0
  %589 = vmatprep.subr.bf16.mxu0 0
  %590 = vmatpush1.bf16.msra.mxu0 0
  %591 = vmatprep.subr.bf16.mxu0 0
  %592 = vmatpush1.bf16.msra.mxu0 0
  %593 = vmatprep.subr.bf16.mxu0 0
  %594 = vmatpush1.bf16.msra.mxu0 0
  %595 = vmatprep.subr.bf16.mxu0 0
  %596 = vmatpush1.bf16.msra.mxu0 0
  %597 = vmatprep.subr.bf16.mxu0 0
  %598 = vmatpush1.bf16.msra.mxu0 0
  %599 = vmatprep.subr.bf16.mxu0 0
  %600 = vmatpush1.bf16.msra.mxu0 0
  %601 = vmatprep.mubr.bf16.mxu0 0
  %602 = vmatmul.mubr.bf16.gmra.mrb[0].mxu0 %v560
  %v603 = vpop.f32.mrb[0].mxu0
  %v604 = vadd.f32 0.0, %v603
  %v605 = vpop.f32.mrb[0].mxu0
  %v606 = vpop.f32.mrb[0].mxu0
  %v607 = vpop.f32.mrb[0].mxu0
  %608 = vdwg.mxu0
  %v609 = vadd.f32 %v25, %v25
  %v610 = vadd.f32 %v609, %v604
  %v611 = vmul.f32 %v604, %v610
  %v613 = vrot.slane %v604, 2
  %v615 = vadd.f32 %v609, %v613
  %v617 = vrot.slane %v615, 6
  %v619 = vmul.f32 %v604, %v617
  %v621 = vrot.slane %v619, 2
  %v623 = vadd.f32 %v611, %v621
  %v624 = vmul.f32 %v623, 0.5
  %v625 = vsub.f32 %v604, %v613
  %v626 = vmul.f32 %v625, 0.5
  %v627 = vsel %vm30, %v624, %v626
  %628 = vst [vmem:[%s4] sm:$0x3] %v627
  // Predicated region
  $region18: #{net_v4_forward.1} parent=0 // pred_check
    _
  $region19: #{net_v4_forward.1} parent=0 // pred_check_branch
    %630 = sbr.rel (0) target = $region21
  $region20: #{net_v4_forward.1} parent=0 // pred_region
    _
  $region21: #{net_v4_forward.1} parent=0 // pred_fallthru
    _
  // Predicated region
  $region22: #{net_v4_forward.1} parent=0 // pred_check
    _
  $region23: #{net_v4_forward.1} parent=0 // pred_check_branch
    %632 = sbr.rel (0) target = $region25
  $region24: #{net_v4_forward.1} parent=0 // pred_region
    _
  $region25: #{net_v4_forward.1} parent=0 // pred_fallthru
    _

</llo_original>
